<compile_context>
chip_gen: v6e
topology: v6e:2x2x1
jax: 0.10.0
libtpu: 0.0.40
codegen_flags: <defaults>
</compile_context>

<pallas_src>
import math

import jax
import jax.numpy as jnp
import numpy as np
from jax.experimental import pallas as pl
from jax.experimental.pallas import tpu as pltpu

_LANE = 128  # TPU vreg lane width


def _copy_kernel(x_ref, o_ref):
    # Identity copy of the current (tile_rows, lanes) block.
    o_ref[...] = x_ref[...]


def _choose_layout(total, itemsize):
    """Pick (lanes, rows, tile_rows) for a 128-aligned flat element count."""
    # Widest lane extent (multiple of 128) that divides the element count.
    lanes = _LANE
    for cand in (1024, 512, 256):
        if total % cand == 0:
            lanes = cand
            break
    rows = total // lanes

    # Minimum legal sublane tile: 8 rows (f32), 16 (bf16), 32 (int8).
    min_rows = 8 * max(1, 4 // itemsize)

    # ~2 MiB blocks: (1 in + 1 out) x double-buffer x 2 MiB ~= 8 MiB VMEM,
    # safe under every generation's default scoped-VMEM budget.
    target_block_bytes = 2 * 1024 * 1024
    tile_r = max(min_rows, target_block_bytes // (lanes * itemsize))
    tile_r -= tile_r % min_rows
    if rows <= tile_r:
        tile_r = rows  # single full-extent block (always legal)
    return lanes, rows, tile_r


def _pallas_flat_copy(slab, tile_r, lanes):
    """Tiled identity copy of a (rows, lanes) slab through VMEM."""
    rows = slab.shape[0]
    grid = (pl.cdiv(rows, tile_r),)  # boundary block (if any) is masked by Pallas
    return pl.pallas_call(
        _copy_kernel,
        out_shape=jax.ShapeDtypeStruct(slab.shape, slab.dtype),
        grid_spec=pltpu.PrefetchScalarGridSpec(
            num_scalar_prefetch=0,
            grid=grid,
            in_specs=[pl.BlockSpec((tile_r, lanes), lambda i: (i, 0))],
            out_specs=pl.BlockSpec((tile_r, lanes), lambda i: (i, 0)),
        ),
        compiler_params=pltpu.CompilerParams(
            dimension_semantics=("parallel",),  # shards across both TCs on v7x
        ),
    )(slab)


def _aligned_impl(x, out_shape):
    """total % 128 == 0: the whole contiguous buffer goes through Pallas."""
    total = math.prod(x.shape)
    lead = total // math.prod(out_shape)
    itemsize = jnp.dtype(x.dtype).itemsize
    lanes, rows, tile_r = _choose_layout(total, itemsize)
    copied = _pallas_flat_copy(x.reshape(rows, lanes), tile_r, lanes)
    # Metadata-only reshape, exactly like torch .view on contiguous data.
    return copied.reshape((lead,) + out_shape)


def _unaligned_impl(x, out_shape):
    """total % 128 != 0: Pallas copies the 128-aligned prefix; the sub-128
    element tail is stitched back with a cheap XLA concatenate (no pad/crop)."""
    total = math.prod(x.shape)
    lead = total // math.prod(out_shape)
    flat = x.reshape(-1)
    aligned = (total // _LANE) * _LANE
    if aligned == 0:
        # TODO(synk): fewer than 128 elements — no legal lane-aligned Pallas
        # tile exists; keep the metadata-only JAX reshape for this tiny case.
        return flat.reshape((lead,) + out_shape)
    itemsize = jnp.dtype(x.dtype).itemsize
    lanes, rows, tile_r = _choose_layout(aligned, itemsize)
    head = _pallas_flat_copy(flat[:aligned].reshape(rows, lanes), tile_r, lanes)
    out_flat = jnp.concatenate([head.reshape(-1), flat[aligned:]])
    return out_flat.reshape((lead,) + out_shape)


_reshape_aligned = jax.jit(_aligned_impl, static_argnums=(1,))
_reshape_unaligned = jax.jit(_unaligned_impl, static_argnums=(1,))


def reshape_forward(x, out_shape):
    """Equivalent of torch: x.view(-1, *out_shape)."""
    out_shape = tuple(int(d) for d in out_shape)
    total = math.prod(x.shape)
    tail = math.prod(out_shape)
    if tail == 0 or total % tail != 0:
        raise ValueError(f"cannot view shape {x.shape} as (-1, {out_shape})")
    if total == 0:
        return jnp.reshape(x, (0,) + out_shape)
    if total % _LANE == 0:
        return _reshape_aligned(x, out_shape)
    return _reshape_unaligned(x, out_shape)


if __name__ == "__main__":
    key = jax.random.PRNGKey(0)
    # Input: (2, 4, 16, 16) f32 — 2048 elements -> view(-1, 8, 32) => (8, 8, 32).
    x = jax.random.normal(key, (2, 4, 16, 16), dtype=jnp.float32)
    out_shape = (8, 32)

    x_np = np.asarray(x)
    x_dtype = x.dtype
    y_ref = x_np.reshape((-1,) + out_shape)

    y = reshape_forward(x, out_shape)
    y = jax.block_until_ready(y)

    assert y.shape == (8, 8, 32), y.shape
    assert y.dtype == x_dtype, y.dtype
    assert np.array_equal(np.asarray(y), y_ref)
    print("KERNEL_OK")
</pallas_src>

<mosaic_0001>
module attributes {stable_mosaic.version = 11 : i64} {
  func.func @_copy_kernel(%arg0: i32, %arg1: memref<2x1024xf32, #tpu.memory_space<vmem>>, %arg2: memref<2x1024xf32, #tpu.memory_space<vmem>>) attributes {dimension_semantics = [#tpu.dimension_semantics<parallel>], iteration_bounds = array<i64: 1>, scalar_prefetch = 0 : i64, scratch_operands = 0 : i64, tpu.core_type = #tpu.core_type<tc>, window_params = [{transform_indices = @transform_0, window_bounds = array<i64: 2, 1024>}, {transform_indices = @transform_1, window_bounds = array<i64: 2, 1024>}]} {
    %c0 = arith.constant 0 : index
    %c0_0 = arith.constant 0 : index
    %0 = vector.load %arg1[%c0, %c0_0] : memref<2x1024xf32, #tpu.memory_space<vmem>>, vector<2x1024xf32>
    %c0_1 = arith.constant 0 : index
    %c0_2 = arith.constant 0 : index
    %1 = vector.load %arg2[%c0_1, %c0_2] : memref<2x1024xf32, #tpu.memory_space<vmem>>, vector<2x1024xf32>
    tpu.vector_store %arg2[%c0_1, %c0_2], %0 {strides = array<i32>} : memref<2x1024xf32, #tpu.memory_space<vmem>>, vector<2x1024xf32>,
    return
  }
  func.func @transform_0(%arg0: i32) -> (i32, i32) {
    %c0_i32 = arith.constant 0 : i32
    %c0_i32_0 = arith.constant 0 : i32
    return %arg0, %c0_i32 : i32, i32
  }
  func.func @transform_1(%arg0: i32) -> (i32, i32) {
    %c0_i32 = arith.constant 0 : i32
    %c0_i32_0 = arith.constant 0 : i32
    return %arg0, %c0_i32 : i32, i32
  }
}

</mosaic_0001>

<llo_original>
// kernel: _aligned_impl.1
$region0: #{_aligned_impl.1}
  #allocation0 [shape = 'u32[]', space=smem, size = 0x4, offset = 0x4, fixed_abs, tag = 'smem constant byte address 0x4 - core index']
  #allocation1 [shape = 'u32[144,128]{1,0:T(1,128)}', space=vmem, size = 0x12000, scoped, tag = 'internal scratch']
  %s0 = inlined_call_operand.vmem [shape: f32[2,1024], index: 0, kind: input, shape index: {}]
  %s1 = inlined_call_operand.vmem [shape: f32[2,1024], index: 1, kind: output, shape index: {}]
  %s2 = sld [smem:[#allocation0]]
  $region14: #{_aligned_impl.1} parent=0
    _
  %s4 = ssub.s32 1, %s2
  %s5 = scalar_select 0, %s4, %s2
  // Predicated region
  $region2: #{_aligned_impl.1} parent=0 // pred_check
    _
  $region3: #{_aligned_impl.1} parent=0 // pred_check_branch
    %7 = sbr.rel (0) target = $region5
  $region4: #{_aligned_impl.1} parent=0 // pred_region
    _
  $region5: #{_aligned_impl.1} parent=0 // pred_fallthru
    _
  %v8 = vld [vmem:[%s0] sm:$0xff]
  %v9 = vld [vmem:[%s0 + $0x8] sm:$0xff]
  %10 = vst [vmem:[%s1] sm:$0xff] %v8
  %11 = vst [vmem:[%s1 + $0x8] sm:$0xff] %v9
  // Predicated region
  $region6: #{_aligned_impl.1} parent=0 // pred_check
    _
  $region7: #{_aligned_impl.1} parent=0 // pred_check_branch
    %13 = sbr.rel (0) target = $region9
  $region8: #{_aligned_impl.1} parent=0 // pred_region
    _
  $region9: #{_aligned_impl.1} parent=0 // pred_fallthru
    _
  // Predicated region
  $region10: #{_aligned_impl.1} parent=0 // pred_check
    _
  $region11: #{_aligned_impl.1} parent=0 // pred_check_branch
    %15 = sbr.rel (0) target = $region13
  $region12: #{_aligned_impl.1} parent=0 // pred_region
    _
  $region13: #{_aligned_impl.1} parent=0 // pred_fallthru
    _

</llo_original>
